<compile_context>
chip_gen: v6e
topology: v6e:2x2x1
jax: 0.10.0
libtpu: 0.0.40
codegen_flags: <defaults>
</compile_context>

<pallas_src>
import functools

import jax
import jax.numpy as jnp
from jax import lax
from jax.experimental import pallas as pl
from jax.experimental.pallas import tpu as pltpu


def _cdiv(a, b):
    return (a + b - 1) // b


def _round_up(x, m):
    return _cdiv(x, m) * m


def _choose_tile(hw, *, cap=32768, chunk=512):
    """Return (tile_lanes, chunk_lanes).

    tile_lanes: per-grid-step lane count -- largest multiple of `chunk`
    (<= cap) needed to cover hw; never degenerates to tiny tiles.
    chunk_lanes: in-kernel strip-mine width. Both are multiples of 128.
    """
    hw128 = _round_up(hw, 128)
    if hw128 <= chunk:
        return hw128, hw128
    return min(cap, _round_up(hw, chunk)), chunk


def _chunk_for(tile, max_chunk=512):
    """Largest multiple of 128 <= max_chunk that divides tile."""
    c = min(tile, (max_chunk // 128) * 128)
    while c > 128 and tile % c != 0:
        c -= 128
    return max(c, 128)


def _soft_iou_kernel(logit_ref, target_ref, inter_ref, other_ref, *,
                     n_classes, hw, tile, chunk, tiles_per_split, needs_mask):
    # logit_ref: (C, tile) native dtype; target_ref: (1, tile) int32
    # inter_ref / other_ref: (C, 1) f32, resident across the reduction axis.
    t_idx = pl.program_id(2)
    C = n_classes
    n_chunks = tile // chunk

    @pl.when(t_idx == 0)
    def _():
        inter_ref[...] = jnp.zeros_like(inter_ref)
        other_ref[...] = jnp.zeros_like(other_ref)

    # Hoisted loop invariants (JAX does not CSE broadcasts inside the loop).
    cls = lax.broadcasted_iota(jnp.int32, (C, 1), 0)          # class ids, sublanes
    if needs_mask:
        lane = lax.broadcasted_iota(jnp.int32, (1, chunk), 1)
        block_base = (pl.program_id(1) * tiles_per_split + t_idx) * tile

    def chunk_body(ci, carry):
        acc_i, acc_o = carry
        off = pl.multiple_of(ci * chunk, chunk)

        x = logit_ref[:, pl.ds(off, chunk)]                    # (C, chunk) native dtype
        t = target_ref[:, pl.ds(off, chunk)]                   # (1, chunk) int32

        # Softmax over the class (sublane) axis == F.softmax(logit, dim=1).
        # For bf16 inputs max/sub/exp stay bf16 (VPU/EUP bf16-native on
        # v6e/v7x); reductions/accumulation are always f32.
        m = jnp.max(x, axis=0, keepdims=True)                  # (1, chunk)
        e = jnp.exp(x - m)                                     # (C, chunk)
        ef = e.astype(jnp.float32)                             # no-op for f32 inputs
        s = jnp.sum(ef, axis=0, keepdims=True)                 # (1, chunk)
        inv = pl.reciprocal(s, approx=True)                    # EUP slot
        pred = ef * inv                                        # (C, chunk) f32

        if needs_mask:
            # Out-of-range lanes of a partial tile hold unspecified data
            # (possibly inf/NaN): select away pred and retarget to the
            # sentinel class C so the one-hot is all-zero there.
            valid = (lane + (block_base + off)) < hw           # (1, chunk)
            pred = jnp.where(valid, pred, 0.0)
            t = jnp.where(valid, t, C)

        onehot = cls == t                                      # (C, chunk) bool
        inter_c = jnp.sum(jnp.where(onehot, pred, 0.0),
                          axis=1, keepdims=True)               # (C, 1)
        # other = sum_pred + count, folded into one reduction.
        other_c = jnp.sum(jnp.where(onehot, pred + 1.0, pred),
                          axis=1, keepdims=True)               # (C, 1)
        return acc_i + inter_c, acc_o + other_c

    init = (jnp.zeros((C, 1), jnp.float32), jnp.zeros((C, 1), jnp.float32))
    unroll = True if n_chunks <= 8 else 8
    acc_i, acc_o = lax.fori_loop(0, n_chunks, chunk_body, init, unroll=unroll)

    inter_ref[...] += acc_i
    other_ref[...] += acc_o


def soft_iou_loss(logit, target, n_classes=19, *, tile_lanes=None,
                  chunk_lanes=512, spatial_splits=None):
    """logit: (N, C, H, W) float (f32 or bf16), target: (N, H, W) int.

    Returns the scalar SoftIoU loss, matching the PyTorch forward.
    """
    N, C, H, W = logit.shape
    assert C == n_classes
    HW = H * W

    if tile_lanes is None:
        T, CHUNK = _choose_tile(HW, chunk=chunk_lanes)
    else:
        T = tile_lanes
        assert T % 128 == 0
        CHUNK = _chunk_for(T, chunk_lanes)
    assert T % CHUNK == 0

    num_blocks = _cdiv(HW, T)
    # Split spatial tiles across a second "parallel" axis so both v7x
    # TensorCores have work when N is small (single-TC chips just loop).
    if spatial_splits is None:
        spatial_splits = 2 if (N == 1 and num_blocks >= 2) else 1
    S = max(1, min(spatial_splits, num_blocks))
    tps = _cdiv(num_blocks, S)                 # tiles per split
    needs_mask = (S * tps * T) != HW           # any padded / remainder lanes?

    logit_r = logit.reshape(N, C, HW)          # view: no cast, no pad pass
    if target.dtype != jnp.int32:
        target = target.astype(jnp.int32)
    target_r = target.reshape(N, 1, HW)

    kernel = functools.partial(
        _soft_iou_kernel, n_classes=C, hw=HW, tile=T, chunk=CHUNK,
        tiles_per_split=tps, needs_mask=needs_mask)

    def in_map(n, h, t):
        # Clamp remainder tiles onto the last real block; their contribution
        # is zeroed by the in-kernel position mask.
        return (n, 0, jnp.minimum(h * tps + t, num_blocks - 1))

    def out_map(n, h, t):
        return (n, h, 0, 0)

    inter, other = pl.pallas_call(
        kernel,
        out_shape=(jax.ShapeDtypeStruct((N, S, C, 1), jnp.float32),
                   jax.ShapeDtypeStruct((N, S, C, 1), jnp.float32)),
        grid_spec=pltpu.PrefetchScalarGridSpec(
            num_scalar_prefetch=0,
            grid=(N, S, tps),
            in_specs=[
                pl.BlockSpec((None, C, T), in_map),
                pl.BlockSpec((None, 1, T), in_map),
            ],
            out_specs=[
                pl.BlockSpec((None, None, C, 1), out_map),
                pl.BlockSpec((None, None, C, 1), out_map),
            ],
        ),
        compiler_params=pltpu.CompilerParams(
            dimension_semantics=("parallel", "parallel", "arbitrary"),
            vmem_limit_bytes=32 * 1024 * 1024),
    )(logit_r, target_r)

    # Tiny epilogue: combine split partials, form IoU ratio, mean over (N, C).
    inter_nc = inter[..., 0].sum(axis=1)       # (N, C)
    other_nc = other[..., 0].sum(axis=1)       # (N, C): sum_pred + count
    union_nc = other_nc - inter_nc
    loss_nc = inter_nc / (union_nc + 1e-16)
    return -jnp.mean(loss_nc)


def _reference(logit, target, n_classes):
    # Pure-JAX reference matching the PyTorch forward exactly.
    N = logit.shape[0]
    pred = jax.nn.softmax(logit.astype(jnp.float32), axis=1)
    onehot = jax.nn.one_hot(target, n_classes, axis=1, dtype=jnp.float32)
    inter = (pred * onehot).reshape(N, n_classes, -1).sum(2)
    union = (pred + onehot - pred * onehot).reshape(N, n_classes, -1).sum(2)
    loss = inter / (union + 1e-16)
    return -loss.mean()


if __name__ == "__main__":
    key = jax.random.PRNGKey(0)
    k1, k2, k3, k4, k5, k6 = jax.random.split(key, 6)
    CLS = 19

    # Case 1: single spatial tile, exact fit (no masking), f32 streaming.
    N, H, W = 2, 16, 16
    logit = jax.random.normal(k1, (N, CLS, H, W), dtype=jnp.float32)
    target = jax.random.randint(k2, (N, H, W), 0, CLS, dtype=jnp.int32)
    loss = jax.block_until_ready(soft_iou_loss(logit, target, n_classes=CLS))
    ref = _reference(logit, target, CLS)
    assert jnp.allclose(loss, ref, atol=1e-3, rtol=1e-3), (loss, ref)

    # Case 1b: bf16 streaming path (bf16 elementwise math), loose tolerance.
    loss_bf = jax.block_until_ready(
        soft_iou_loss(logit.astype(jnp.bfloat16), target, n_classes=CLS))
    assert jnp.allclose(loss_bf, ref, atol=5e-3, rtol=5e-2), (loss_bf, ref)

    # Case 2: HW not a multiple of 128 -> in-kernel tail masking, no padding.
    N, H, W = 2, 13, 17
    logit = jax.random.normal(k3, (N, CLS, H, W), dtype=jnp.float32)
    target = jax.random.randint(k4, (N, H, W), 0, CLS, dtype=jnp.int32)
    loss = jax.block_until_ready(soft_iou_loss(logit, target, n_classes=CLS))
    ref = _reference(logit, target, CLS)
    assert jnp.allclose(loss, ref, atol=1e-3, rtol=1e-3), (loss, ref)

    # Case 3: N=1 with forced small tiles -> spatial split (S=2), multi-tile
    # accumulation, remainder tile masking.
    N, H, W = 1, 20, 20
    logit = jax.random.normal(k5, (N, CLS, H, W), dtype=jnp.float32)
    target = jax.random.randint(k6, (N, H, W), 0, CLS, dtype=jnp.int32)
    loss = jax.block_until_ready(
        soft_iou_loss(logit, target, n_classes=CLS, tile_lanes=128))
    ref = _reference(logit, target, CLS)
    assert jnp.allclose(loss, ref, atol=1e-3, rtol=1e-3), (loss, ref)

    print("KERNEL_OK")
</pallas_src>

<mosaic_0001>
module attributes {stable_mosaic.version = 11 : i64} {
  func.func @_soft_iou_kernel(%arg0: i32, %arg1: i32, %arg2: i32, %arg3: memref<1x19x256xf32, #tpu.memory_space<vmem>>, %arg4: memref<1x1x256xi32, #tpu.memory_space<vmem>>, %arg5: memref<1x1x19x1xf32, #tpu.memory_space<vmem>>, %arg6: memref<1x1x19x1xf32, #tpu.memory_space<vmem>>) attributes {dimension_semantics = [#tpu.dimension_semantics<parallel>, #tpu.dimension_semantics<parallel>, #tpu.dimension_semantics<arbitrary>], iteration_bounds = array<i64: 2, 1, 1>, scalar_prefetch = 0 : i64, scratch_operands = 0 : i64, tpu.core_type = #tpu.core_type<tc>, window_params = [{transform_indices = @transform_0, window_bounds = array<i64: 1, 19, 256>}, {transform_indices = @transform_1, window_bounds = array<i64: 1, 1, 256>}, {transform_indices = @transform_2, window_bounds = array<i64: 1, 1, 19, 1>}, {transform_indices = @transform_3, window_bounds = array<i64: 1, 1, 19, 1>}]} {
    %c0_i32 = arith.constant 0 : i32
    %0 = arith.cmpi eq, %arg2, %c0_i32 : i32
    %1 = arith.extui %0 : i1 to i32
    %c0_i32_0 = arith.constant 0 : i32
    %2 = arith.cmpi ne, %1, %c0_i32_0 : i32
    scf.if %2 {
      %cst_28 = arith.constant 0.000000e+00 : f32
      %50 = vector.broadcast %cst_28 : f32 to vector<19x1xf32>
      %c0_29 = arith.constant 0 : index
      %c0_30 = arith.constant 0 : index
      %c0_31 = arith.constant 0 : index
      %c0_32 = arith.constant 0 : index
      %51 = vector.load %arg5[%c0_29, %c0_30, %c0_31, %c0_32] : memref<1x1x19x1xf32, #tpu.memory_space<vmem>>, vector<1x1x19x1xf32>
      %52 = vector.shape_cast %51 : vector<1x1x19x1xf32> to vector<19x1xf32>
      %53 = vector.shape_cast %50 : vector<19x1xf32> to vector<1x1x19x1xf32>
      tpu.vector_store %arg5[%c0_29, %c0_30, %c0_31, %c0_32], %53 {strides = array<i32>} : memref<1x1x19x1xf32, #tpu.memory_space<vmem>>, vector<1x1x19x1xf32>,
      %cst_33 = arith.constant 0.000000e+00 : f32
      %54 = vector.broadcast %cst_33 : f32 to vector<19x1xf32>
      %c0_34 = arith.constant 0 : index
      %c0_35 = arith.constant 0 : index
      %c0_36 = arith.constant 0 : index
      %c0_37 = arith.constant 0 : index
      %55 = vector.load %arg6[%c0_34, %c0_35, %c0_36, %c0_37] : memref<1x1x19x1xf32, #tpu.memory_space<vmem>>, vector<1x1x19x1xf32>
      %56 = vector.shape_cast %55 : vector<1x1x19x1xf32> to vector<19x1xf32>
      %57 = vector.shape_cast %54 : vector<19x1xf32> to vector<1x1x19x1xf32>
      tpu.vector_store %arg6[%c0_34, %c0_35, %c0_36, %c0_37], %57 {strides = array<i32>} : memref<1x1x19x1xf32, #tpu.memory_space<vmem>>, vector<1x1x19x1xf32>,
    } else {
    }
    %3 = tpu.iota {dimensions = array<i32: 0>} : vector<19x1xi32>
    %cst = arith.constant 0.000000e+00 : f32
    %4 = vector.broadcast %cst : f32 to vector<19x1xf32>
    %cst_1 = arith.constant 0.000000e+00 : f32
    %5 = vector.broadcast %cst_1 : f32 to vector<19x1xf32>
    %c0_i32_2 = arith.constant 0 : i32
    %c256_i32 = arith.constant 256 : i32
    %6 = arith.muli %c0_i32_2, %c256_i32 : i32
    %7 = tpu.assume_multiple %6, 256 : i32
    %c0 = arith.constant 0 : index
    %c0_3 = arith.constant 0 : index
    %8 = arith.index_cast %7 : i32 to index
    %9 = vector.load %arg3[%c0, %c0_3, %8] : memref<1x19x256xf32, #tpu.memory_space<vmem>>, vector<1x19x256xf32>
    %10 = vector.shape_cast %9 : vector<1x19x256xf32> to vector<19x256xf32>
    %c0_4 = arith.constant 0 : index
    %c0_5 = arith.constant 0 : index
    %11 = arith.index_cast %7 : i32 to index
    %12 = vector.load %arg4[%c0_4, %c0_5, %11] : memref<1x1x256xi32, #tpu.memory_space<vmem>>, vector<1x1x256xi32>
    %13 = vector.shape_cast %12 : vector<1x1x256xi32> to vector<1x256xi32>
    %cst_6 = arith.constant dense<0xFF800000> : vector<256xf32>
    %14 = vector.multi_reduction <maximumf>, %10, %cst_6 [0] : vector<19x256xf32> to vector<256xf32>
    %15 = vector.shape_cast %14 : vector<256xf32> to vector<1x256xf32>
    %16 = vector.broadcast %15 : vector<1x256xf32> to vector<19x256xf32>
    %17 = arith.subf %10, %16 : vector<19x256xf32>
    %18 = math.exp %17 : vector<19x256xf32>
    %cst_7 = arith.constant dense<0.000000e+00> : vector<256xf32>
    %19 = vector.multi_reduction <add>, %18, %cst_7 [0] : vector<19x256xf32> to vector<256xf32>
    %20 = vector.shape_cast %19 : vector<256xf32> to vector<1x256xf32>
    %21 = tpu.reciprocal %20 {approx = true} : vector<1x256xf32> -> vector<1x256xf32>
    %22 = vector.broadcast %21 : vector<1x256xf32> to vector<19x256xf32>
    %23 = arith.mulf %18, %22 : vector<19x256xf32>
    %24 = vector.broadcast %3 : vector<19x1xi32> to vector<19x256xi32>
    %25 = vector.broadcast %13 : vector<1x256xi32> to vector<19x256xi32>
    %26 = arith.cmpi eq, %24, %25 : vector<19x256xi32>
    %cst_8 = arith.constant 0.000000e+00 : f32
    %27 = vector.broadcast %cst_8 : f32 to vector<19x256xf32>
    %28 = arith.select %26, %23, %27 : vector<19x256xi1>, vector<19x256xf32>
    %cst_9 = arith.constant dense<0.000000e+00> : vector<19xf32>
    %29 = vector.multi_reduction <add>, %28, %cst_9 [1] : vector<19x256xf32> to vector<19xf32>
    %30 = vector.shape_cast %29 : vector<19xf32> to vector<19x1xf32>
    %cst_10 = arith.constant 1.000000e+00 : f32
    %31 = vector.broadcast %cst_10 : f32 to vector<19x256xf32>
    %32 = arith.addf %23, %31 : vector<19x256xf32>
    %33 = arith.select %26, %32, %23 : vector<19x256xi1>, vector<19x256xf32>
    %cst_11 = arith.constant dense<0.000000e+00> : vector<19xf32>
    %34 = vector.multi_reduction <add>, %33, %cst_11 [1] : vector<19x256xf32> to vector<19xf32>
    %35 = vector.shape_cast %34 : vector<19xf32> to vector<19x1xf32>
    %36 = arith.addf %4, %30 : vector<19x1xf32>
    %37 = arith.addf %5, %35 : vector<19x1xf32>
    %c1_i32 = arith.constant 1 : i32
    %c0_12 = arith.constant 0 : index
    %c0_13 = arith.constant 0 : index
    %c0_14 = arith.constant 0 : index
    %c0_15 = arith.constant 0 : index
    %38 = vector.load %arg5[%c0_12, %c0_13, %c0_14, %c0_15] : memref<1x1x19x1xf32, #tpu.memory_space<vmem>>, vector<1x1x19x1xf32>
    %39 = vector.shape_cast %38 : vector<1x1x19x1xf32> to vector<19x1xf32>
    %40 = arith.addf %39, %36 : vector<19x1xf32>
    %c0_16 = arith.constant 0 : index
    %c0_17 = arith.constant 0 : index
    %c0_18 = arith.constant 0 : index
    %c0_19 = arith.constant 0 : index
    %41 = vector.load %arg5[%c0_16, %c0_17, %c0_18, %c0_19] : memref<1x1x19x1xf32, #tpu.memory_space<vmem>>, vector<1x1x19x1xf32>
    %42 = vector.shape_cast %41 : vector<1x1x19x1xf32> to vector<19x1xf32>
    %43 = vector.shape_cast %40 : vector<19x1xf32> to vector<1x1x19x1xf32>
    tpu.vector_store %arg5[%c0_16, %c0_17, %c0_18, %c0_19], %43 {strides = array<i32>} : memref<1x1x19x1xf32, #tpu.memory_space<vmem>>, vector<1x1x19x1xf32>,
    %c0_20 = arith.constant 0 : index
    %c0_21 = arith.constant 0 : index
    %c0_22 = arith.constant 0 : index
    %c0_23 = arith.constant 0 : index
    %44 = vector.load %arg6[%c0_20, %c0_21, %c0_22, %c0_23] : memref<1x1x19x1xf32, #tpu.memory_space<vmem>>, vector<1x1x19x1xf32>
    %45 = vector.shape_cast %44 : vector<1x1x19x1xf32> to vector<19x1xf32>
    %46 = arith.addf %45, %37 : vector<19x1xf32>
    %c0_24 = arith.constant 0 : index
    %c0_25 = arith.constant 0 : index
    %c0_26 = arith.constant 0 : index
    %c0_27 = arith.constant 0 : index
    %47 = vector.load %arg6[%c0_24, %c0_25, %c0_26, %c0_27] : memref<1x1x19x1xf32, #tpu.memory_space<vmem>>, vector<1x1x19x1xf32>
    %48 = vector.shape_cast %47 : vector<1x1x19x1xf32> to vector<19x1xf32>
    %49 = vector.shape_cast %46 : vector<19x1xf32> to vector<1x1x19x1xf32>
    tpu.vector_store %arg6[%c0_24, %c0_25, %c0_26, %c0_27], %49 {strides = array<i32>} : memref<1x1x19x1xf32, #tpu.memory_space<vmem>>, vector<1x1x19x1xf32>,
    return
  }
  func.func @transform_0(%arg0: i32, %arg1: i32, %arg2: i32) -> (i32, i32, i32) {
    %c1_i32 = arith.constant 1 : i32
    %0 = arith.muli %arg1, %c1_i32 : i32
    %1 = arith.addi %0, %arg2 : i32
    %c0_i32 = arith.constant 0 : i32
    %2 = arith.minsi %1, %c0_i32 : i32
    %c0_i32_0 = arith.constant 0 : i32
    %c0_i32_1 = arith.constant 0 : i32
    return %arg0, %c0_i32_0, %2 : i32, i32, i32
  }
  func.func @transform_1(%arg0: i32, %arg1: i32, %arg2: i32) -> (i32, i32, i32) {
    %c1_i32 = arith.constant 1 : i32
    %0 = arith.muli %arg1, %c1_i32 : i32
    %1 = arith.addi %0, %arg2 : i32
    %c0_i32 = arith.constant 0 : i32
    %2 = arith.minsi %1, %c0_i32 : i32
    %c0_i32_0 = arith.constant 0 : i32
    %c0_i32_1 = arith.constant 0 : i32
    return %arg0, %c0_i32_0, %2 : i32, i32, i32
  }
  func.func @transform_2(%arg0: i32, %arg1: i32, %arg2: i32) -> (i32, i32, i32, i32) {
    %c0_i32 = arith.constant 0 : i32
    %c0_i32_0 = arith.constant 0 : i32
    %c0_i32_1 = arith.constant 0 : i32
    return %arg0, %arg1, %c0_i32, %c0_i32_0 : i32, i32, i32, i32
  }
  func.func @transform_3(%arg0: i32, %arg1: i32, %arg2: i32) -> (i32, i32, i32, i32) {
    %c0_i32 = arith.constant 0 : i32
    %c0_i32_0 = arith.constant 0 : i32
    %c0_i32_1 = arith.constant 0 : i32
    return %arg0, %arg1, %c0_i32, %c0_i32_0 : i32, i32, i32, i32
  }
}

</mosaic_0001>

<llo_original>
// kernel: tpu_custom_call.1
$region0: #{tpu_custom_call.1}
  #allocation0 [shape = 'u32[]', space=smem, size = 0x4, offset = 0x4, fixed_abs, tag = 'smem constant byte address 0x4 - core index']
  #allocation1 [shape = 'u32[144,128]{1,0:T(1,128)}', space=vmem, size = 0x12000, scoped, tag = 'internal scratch']
  %s0 = inlined_call_operand.vmem [shape: f32[2,19,256], index: 0, kind: input, shape index: {}]
  %s1 = inlined_call_operand.vmem [shape: s32[2,1,256], index: 1, kind: input, shape index: {}]
  %s2 = inlined_call_operand.vmem [shape: f32[2,1,19,1], index: 2, kind: output, shape index: {0}]
  %s3 = inlined_call_operand.vmem [shape: f32[2,1,19,1], index: 3, kind: output, shape index: {1}]
  %4 = xla_tuple %s2, %s3
  %s5 = sld [smem:[#allocation0]]
  $region53: #{tpu_custom_call.1} parent=0
    _
  %s7 = ssub.s32 1, %s5
  %s8 = scalar_select 0, %s7, %s5
  loop: start=0, step=1, limit=4
  $region2: #{tpu_custom_call.1} parent=0 // loop_pre_header
    _
  $region3: #{tpu_custom_call.1} parent=0 // loop_header
    %s10 = sphi 0, %s14
    %p11 = scmp.ge.s32.totalorder %s10, 4
    %s17 = sphi 0, %s36
    %s18 = sphi 0, %s32
    %s19 = sphi 0, %s28
    %s20 = sphi 0, %s17
    %s21 = sphi 0, %s18
    %s22 = sphi 0, %s19
    %s23 = sphi 0, %s20
    %s24 = sphi 0, %s21
    %s25 = sphi 0, %s22
    %s47 = sphi 0, %s49
    %s50 = sphi 0, %s47
    %s51 = sphi 0, %s50
    %s67 = sphi 0, %s51
    %s81 = sphi 0, %s83
    %s84 = sphi 0, %s81
    %s85 = sphi 0, %s84
    %s101 = sphi 0, %s85
    %s109 = sphi 0, %s111
    %s112 = sphi 0, %s109
    %s113 = sphi 0, %s112
    %s129 = sphi 0, %s113
    %s137 = sphi 0, %s139
    %s140 = sphi 0, %s137
    %s141 = sphi 0, %s140
    %s157 = sphi 0, %s141
  $region4: #{tpu_custom_call.1} parent=0 // loop_header_branch
    %13 = sbr.rel (%p11) target = $region8
  $region5: #{tpu_custom_call.1} parent=0 // loop_body
    %s15 = ssub.s32 %s10, 1
    %s16 = ssub.s32 %s10, 2
    %s26 = sadd.s32 1, %s19
    %p27 = scmp.ge.s32.totalorder %s26, 1
    %s28 = scalar_select %p27, 0, %s26
    %s29 = sadd.s32 1, %s18
    %s30 = scalar_select %p27, %s29, %s18
    %p31 = scmp.ge.s32.totalorder %s30, 1
    %s32 = scalar_select %p31, 0, %s30
    %s33 = sadd.s32 1, %s17
    %s34 = scalar_select %p31, %s33, %s17
    %p35 = scmp.ge.s32.totalorder %s34, 2
    %s36 = scalar_select %p35, 0, %s34
    %s37 = sadd.s32 %s18, %s19
    %p38 = scmp.lt.s32.totalorder %s37, 0
    %s39 = scalar_select %p38, %s37, 0
    %s40 = sadd.s32 %s32, %s28
    %p41 = scmp.lt.s32.totalorder %s40, 0
    %s42 = scalar_select %p41, %s40, 0
    %s43 = ssub.s32 %s17, %s36
    %s44 = ssub.s32 %s39, %s42
    %s45 = sor.u32 %s43, %s44
    %p46 = scmp.eq.s32.totalorder %s45, 0
    %s48 = sadd.s32 %s47, 1
    %s49 = scalar_select %p46, %s47, %s48
    %p52 = pneg %p46
    %p53 = scmp.eq.s32.totalorder %s10, 1
    %p54 = por %p52, %p53
    %p55 = scmp.ne.s32.totalorder %s47, %s50
    %p56 = scmp.eq.s32.totalorder %s10, 0
    %p57 = por %p55, %p56
    %p58 = scmp.ne.s32.totalorder %s47, %s50
    %p59 = scmp.eq.s32.totalorder %s15, 1
    %p60 = por %p58, %p59
    %p61 = scmp.ne.s32.totalorder %s50, %s51
    %p62 = scmp.eq.s32.totalorder %s15, 0
    %p63 = por %p61, %p62
    %p64 = scmp.ne.s32.totalorder %s50, %s51
    %p65 = scmp.eq.s32.totalorder %s16, 1
    %p66 = por %p64, %p65
    %p68 = scmp.ne.s32.totalorder %s51, %s67
    %p69 = scmp.eq.s32.totalorder %s16, 0
    %p70 = por %p68, %p69
    %s71 = sadd.s32 %s18, %s19
    %p72 = scmp.lt.s32.totalorder %s71, 0
    %s73 = scalar_select %p72, %s71, 0
    %s74 = sadd.s32 %s32, %s28
    %p75 = scmp.lt.s32.totalorder %s74, 0
    %s76 = scalar_select %p75, %s74, 0
    %s77 = ssub.s32 %s17, %s36
    %s78 = ssub.s32 %s73, %s76
    %s79 = sor.u32 %s77, %s78
    %p80 = scmp.eq.s32.totalorder %s79, 0
    %s82 = sadd.s32 %s81, 1
    %s83 = scalar_select %p80, %s81, %s82
    %p86 = pneg %p80
    %p87 = scmp.eq.s32.totalorder %s10, 1
    %p88 = por %p86, %p87
    %p89 = scmp.ne.s32.totalorder %s81, %s84
    %p90 = scmp.eq.s32.totalorder %s10, 0
    %p91 = por %p89, %p90
    %p92 = scmp.ne.s32.totalorder %s81, %s84
    %p93 = scmp.eq.s32.totalorder %s15, 1
    %p94 = por %p92, %p93
    %p95 = scmp.ne.s32.totalorder %s84, %s85
    %p96 = scmp.eq.s32.totalorder %s15, 0
    %p97 = por %p95, %p96
    %p98 = scmp.ne.s32.totalorder %s84, %s85
    %p99 = scmp.eq.s32.totalorder %s16, 1
    %p100 = por %p98, %p99
    %p102 = scmp.ne.s32.totalorder %s85, %s101
    %p103 = scmp.eq.s32.totalorder %s16, 0
    %p104 = por %p102, %p103
    %s105 = ssub.s32 %s17, %s36
    %s106 = ssub.s32 %s18, %s32
    %s107 = sor.u32 %s105, %s106
    %p108 = scmp.eq.s32.totalorder %s107, 0
    %s110 = sadd.s32 %s109, 1
    %s111 = scalar_select %p108, %s109, %s110
    %p114 = pneg %p108
    %p115 = scmp.eq.s32.totalorder %s10, 1
    %p116 = por %p114, %p115
    %p117 = scmp.ne.s32.totalorder %s109, %s112
    %p118 = scmp.eq.s32.totalorder %s10, 0
    %p119 = por %p117, %p118
    %p120 = scmp.ne.s32.totalorder %s109, %s112
    %p121 = scmp.eq.s32.totalorder %s15, 1
    %p122 = por %p120, %p121
    %p123 = scmp.ne.s32.totalorder %s112, %s113
    %p124 = scmp.eq.s32.totalorder %s15, 0
    %p125 = por %p123, %p124
    %p126 = scmp.ne.s32.totalorder %s112, %s113
    %p127 = scmp.eq.s32.totalorder %s16, 1
    %p128 = por %p126, %p127
    %p130 = scmp.ne.s32.totalorder %s113, %s129
    %p131 = scmp.eq.s32.totalorder %s16, 0
    %p132 = por %p130, %p131
    %s133 = ssub.s32 %s17, %s36
    %s134 = ssub.s32 %s18, %s32
    %s135 = sor.u32 %s133, %s134
    %p136 = scmp.eq.s32.totalorder %s135, 0
    %s138 = sadd.s32 %s137, 1
    %s139 = scalar_select %p136, %s137, %s138
    %p142 = pneg %p136
    %p143 = scmp.eq.s32.totalorder %s10, 1
    %p144 = por %p142, %p143
    %p145 = scmp.ne.s32.totalorder %s137, %s140
    %p146 = scmp.eq.s32.totalorder %s10, 0
    %p147 = por %p145, %p146
    %p148 = scmp.ne.s32.totalorder %s137, %s140
    %p149 = scmp.eq.s32.totalorder %s15, 1
    %p150 = por %p148, %p149
    %p151 = scmp.ne.s32.totalorder %s140, %s141
    %p152 = scmp.eq.s32.totalorder %s15, 0
    %p153 = por %p151, %p152
    %p154 = scmp.ne.s32.totalorder %s140, %s141
    %p155 = scmp.eq.s32.totalorder %s16, 1
    %p156 = por %p154, %p155
    %p158 = scmp.ne.s32.totalorder %s141, %s157
    %p159 = scmp.eq.s32.totalorder %s16, 0
    %p160 = por %p158, %p159
    %p161 = scmp.le.s32.totalorder 1, %s10
    %p162 = scmp.lt.s32.totalorder %s10, 3
    %p163 = pnand %p161, %p162
    %p164 = pneg %p163
    // Predicated region
    $region9: #{tpu_custom_call.1} parent=5 // pred_check
      _
    $region10: #{tpu_custom_call.1} parent=5 // pred_check_branch
      %166 = sbr.rel (%p163) target = $region12
    $region11: #{tpu_custom_call.1} parent=5 // pred_region
      %s167 = ssub.s32 %s10, 1
    $region12: #{tpu_custom_call.1} parent=5 // pred_fallthru
      _
    %p168 = scmp.lt.s32.totalorder %s10, 2
    // Predicated region
    $region13: #{tpu_custom_call.1} parent=5 // pred_check
      %p169 = pneg %p168
    $region14: #{tpu_custom_call.1} parent=5 // pred_check_branch
      %171 = sbr.rel (%p169) target = $region16
    $region15: #{tpu_custom_call.1} parent=5 // pred_region
      // Predicated region
      $region17: #{tpu_custom_call.1} parent=15 // pred_check
        %p172 = pneg %p57
      $region18: #{tpu_custom_call.1} parent=15 // pred_check_branch
        %174 = sbr.rel (%p172) target = $region20
      $region19: #{tpu_custom_call.1} parent=15 // pred_region
        %s175 = sadd.s32 %s18, %s19
        %p176 = scmp.lt.s32.totalorder %s175, 0
        %s177 = scalar_select %p176, %s175, 0
        %s178 = smul.u32 2, %s177
        %p179 = scmp.lt.s32.totalorder %s17, 1
        %s180 = scalar_select %p179, %s17, 1
        %p181 = scmp.lt.s32.totalorder %s178, 1
        %s182 = scalar_select %p181, %s178, 1
        %s183 = smul.addr %s180, 6
        %s184 = sadd.s32 %s182, %s183
        %s185 = smul.addr %s184, 8
        %s186 = scalar_lea.vmem %s0, %s185
        %s187 = sadd.s32 %s18, %s19
        %p188 = scmp.lt.s32.totalorder %s187, 0
        %s189 = scalar_select %p188, %s187, 0
        %s190 = smul.u32 2, %s189
      $region20: #{tpu_custom_call.1} parent=15 // pred_fallthru
        _
      // Predicated region
      $region21: #{tpu_custom_call.1} parent=15 // pred_check
        %p191 = pneg %p91
      $region22: #{tpu_custom_call.1} parent=15 // pred_check_branch
        %193 = sbr.rel (%p191) target = $region24
      $region23: #{tpu_custom_call.1} parent=15 // pred_region
        %s194 = sadd.s32 %s18, %s19
        %p195 = scmp.lt.s32.totalorder %s194, 0
        %s196 = scalar_select %p195, %s194, 0
        %s197 = smul.u32 2, %s196
        %p198 = scmp.lt.s32.totalorder %s17, 1
        %s199 = scalar_select %p198, %s17, 1
        %p200 = scmp.lt.s32.totalorder %s197, 1
        %s201 = scalar_select %p200, %s197, 1
        %s202 = smul.addr %s199, 2
        %s203 = sadd.s32 %s201, %s202
        %s204 = scalar_lea.vmem %s1, %s203
        %s205 = sadd.s32 %s18, %s19
        %p206 = scmp.lt.s32.totalorder %s205, 0
        %s207 = scalar_select %p206, %s205, 0
        %s208 = smul.u32 2, %s207
      $region24: #{tpu_custom_call.1} parent=15 // pred_fallthru
        _
    $region16: #{tpu_custom_call.1} parent=5 // pred_fallthru
      _
    %p209 = scmp.le.s32.totalorder 1, %s10
    %p210 = scmp.lt.s32.totalorder %s10, 3
    %p211 = pnand %p209, %p210
    %p212 = pneg %p211
    // Predicated region
    $region25: #{tpu_custom_call.1} parent=5 // pred_check
      _
    $region26: #{tpu_custom_call.1} parent=5 // pred_check_branch
      %214 = sbr.rel (%p211) target = $region28
    $region27: #{tpu_custom_call.1} parent=5 // pred_region
      %s215 = ssub.s32 %s10, 1
      %s216 = sadd.s32 %s21, %s22
      %p217 = scmp.lt.s32.totalorder %s216, 0
      %s218 = scalar_select %p217, %s216, 0
      %s219 = smul.u32 2, %s218
      %p220 = scmp.lt.s32.totalorder %s20, 1
      %s221 = scalar_select %p220, %s20, 1
      %p222 = scmp.lt.s32.totalorder %s219, 1
      %s223 = scalar_select %p222, %s219, 1
      %s224 = smul.addr %s221, 6
      %s225 = sadd.s32 %s223, %s224
      %s226 = smul.addr %s225, 8
      %s227 = scalar_lea.vmem %s0, %s226
      %p228 = pneg %p63
      %p229 = pneg %p60
      %s230 = sadd.s32 %s21, %s22
      %p231 = scmp.lt.s32.totalorder %s230, 0
      %s232 = scalar_select %p231, %s230, 0
      %s233 = smul.u32 2, %s232
      %p234 = scmp.lt.s32.totalorder %s20, 1
      %s235 = scalar_select %p234, %s20, 1
      %p236 = scmp.lt.s32.totalorder %s233, 1
      %s237 = scalar_select %p236, %s233, 1
      %s238 = smul.addr %s235, 2
      %s239 = sadd.s32 %s237, %s238
      %s240 = scalar_lea.vmem %s1, %s239
      %p241 = pneg %p97
      %p242 = pneg %p94
      %p243 = pneg %p125
      %p244 = pneg %p122
      %p245 = scmp.lt.s32.totalorder %s20, 1
      %s246 = scalar_select %p245, %s20, 1
      %p247 = scmp.lt.s32.totalorder %s21, 0
      %s248 = scalar_select %p247, %s21, 0
      %s249 = smul.addr %s248, 3
      %s250 = smul.addr %s246, 3
      %s251 = sadd.s32 %s249, %s250
      %s252 = smul.addr %s251, 8
      %s253 = scalar_lea.vmem %s2, %s252
      %p254 = pneg %p153
      %p255 = pneg %p150
      %p256 = scmp.lt.s32.totalorder %s20, 1
      %s257 = scalar_select %p256, %s20, 1
      %p258 = scmp.lt.s32.totalorder %s21, 0
      %s259 = scalar_select %p258, %s21, 0
      %s260 = smul.addr %s259, 3
      %s261 = smul.addr %s257, 3
      %s262 = sadd.s32 %s260, %s261
      %s263 = smul.addr %s262, 8
      %s264 = scalar_lea.vmem %s3, %s263
      %s265 = sadd.s32 %s21, %s22
      %p266 = scmp.lt.s32.totalorder %s265, 0
      %s267 = scalar_select %p266, %s265, 0
      %s268 = smul.u32 2, %s267
      %p269 = scmp.lt.s32.totalorder %s20, 1
      %s270 = scalar_select %p269, %s20, 1
      %p271 = scmp.lt.s32.totalorder %s268, 1
      %s272 = scalar_select %p271, %s268, 1
      %s273 = smul.addr %s270, 6
      %s274 = sadd.s32 %s272, %s273
      %s275 = smul.addr %s274, 8
      %s276 = scalar_lea.vmem %s0, %s275
      %s277 = sadd.s32 %s21, %s22
      %p278 = scmp.lt.s32.totalorder %s277, 0
      %s279 = scalar_select %p278, %s277, 0
      %s280 = smul.u32 2, %s279
      %s281 = sadd.s32 %s21, %s22
      %p282 = scmp.lt.s32.totalorder %s281, 0
      %s283 = scalar_select %p282, %s281, 0
      %s284 = smul.u32 2, %s283
      %p285 = scmp.lt.s32.totalorder %s20, 1
      %s286 = scalar_select %p285, %s20, 1
      %p287 = scmp.lt.s32.totalorder %s284, 1
      %s288 = scalar_select %p287, %s284, 1
      %s289 = smul.addr %s286, 2
      %s290 = sadd.s32 %s288, %s289
      %s291 = scalar_lea.vmem %s1, %s290
      %s292 = sadd.s32 %s21, %s22
      %p293 = scmp.lt.s32.totalorder %s292, 0
      %s294 = scalar_select %p293, %s292, 0
      %s295 = smul.u32 2, %s294
      %p296 = scmp.lt.s32.totalorder %s20, 1
      %s297 = scalar_select %p296, %s20, 1
      %p298 = scmp.lt.s32.totalorder %s21, 0
      %s299 = scalar_select %p298, %s21, 0
      %s300 = smul.addr %s299, 3
      %s301 = smul.addr %s297, 3
      %s302 = sadd.s32 %s300, %s301
      %s303 = smul.addr %s302, 8
      %s304 = scalar_lea.vmem %s2, %s303
      %p305 = scmp.lt.s32.totalorder %s20, 1
      %s306 = scalar_select %p305, %s20, 1
      %p307 = scmp.lt.s32.totalorder %s21, 0
      %s308 = scalar_select %p307, %s21, 0
      %s309 = smul.addr %s308, 3
      %s310 = smul.addr %s306, 3
      %s311 = sadd.s32 %s309, %s310
      %s312 = smul.addr %s311, 8
      %s313 = scalar_lea.vmem %s3, %s312
      %p314 = scmp.eq.s32.totalorder %s22, 0
      // Predicated region
      $region29: #{tpu_custom_call.1} parent=27 // pred_check
        %p315 = pneg %p314
      $region30: #{tpu_custom_call.1} parent=27 // pred_check_branch
        %317 = sbr.rel (%p315) target = $region32
      $region31: #{tpu_custom_call.1} parent=27 // pred_region
        %vm318 = vcmask 7168
        %319 = vst.msk [vmem:[%s304] sm:$0xff] %vm318, 0.0
        %320 = vst.msk [vmem:[%s304 + $0x8] sm:$0xff] %vm318, 0.0
        %vm321 = vcmask 2048
        %322 = vst.msk [vmem:[%s304 + $0x10] sm:$0x7] %vm321, 0.0
        %323 = vst.msk [vmem:[%s313] sm:$0xff] %vm318, 0.0
        %324 = vst.msk [vmem:[%s313 + $0x8] sm:$0xff] %vm318, 0.0
        %325 = vst.msk [vmem:[%s313 + $0x10] sm:$0x7] %vm321, 0.0
      $region32: #{tpu_custom_call.1} parent=27 // pred_fallthru
        _
      %v326 = vlaneseq
      %v327 = vshrl.u32 %v326, 7
      %v328 = vadd.s32 %v327, 8
      %v329 = vadd.s32 %v327, 16
      %v330 = vld [vmem:[%s276] sm:$0xff]
      %v331 = vld [vmem:[%s276 + $0x8] sm:$0xff]
      %v332 = vld [vmem:[%s276 + $0x10] sm:$0xff]
      %v333 = vld [vmem:[%s276 + $0x18] sm:$0xff]
      %v334 = vld [vmem:[%s276 + $0x20] sm:$0x7]
      %v335 = vld [vmem:[%s276 + $0x28] sm:$0x7]
      %v336 = vld [vmem:[%s291] sm:$0x3]
      %vm337 = vcmask 1042432
      %v338 = vsel %vm337, %v334, -inf
      %v339 = vmax.f32 %v330, %v338
      %v340 = vmax.f32 %v339, %v332
      %v341 = vrot.slane %v340, 4
      %v342 = vmax.f32 %v340, %v341
      %v343 = vrot.slane %v342, 2
      %v344 = vmax.f32 %v342, %v343
      %v345 = vrot.slane %v344, 1
      %v346 = vmax.f32 %v344, %v345
      %v347 = vsel %vm337, %v335, -inf
      %v348 = vmax.f32 %v331, %v347
      %v349 = vmax.f32 %v348, %v333
      %v350 = vrot.slane %v349, 4
      %v351 = vmax.f32 %v349, %v350
      %v352 = vrot.slane %v351, 2
      %v353 = vmax.f32 %v351, %v352
      %v354 = vrot.slane %v353, 1
      %v355 = vmax.f32 %v353, %v354
      %v356 = vsub.f32 %v330, %v346
      %v357 = vsub.f32 %v331, %v355
      %v358 = vsub.f32 %v332, %v346
      %v359 = vsub.f32 %v333, %v355
      %v360 = vsub.f32 %v334, %v346
      %v361 = vsub.f32 %v335, %v355
      %v362 = vmul.f32 %v356, 1.442695
      %v363 = vpow.pop %v362
      %v364 = vmul.f32 %v357, 1.442695
      %v365 = vpow.pop %v364
      %v366 = vmul.f32 %v358, 1.442695
      %v367 = vpow.pop %v366
      %v368 = vmul.f32 %v359, 1.442695
      %v369 = vpow.pop %v368
      %v370 = vmul.f32 %v360, 1.442695
      %v371 = vpow.pop %v370
      %v372 = vmul.f32 %v361, 1.442695
      %v373 = vpow.pop %v372
      %v374 = vadd.f32 %v363, %v367
      %v375 = vsel %vm337, %v371, 0.0
      %v376 = vadd.f32 %v374, %v375
      %v377 = vrot.slane %v376, 4
      %v378 = vadd.f32 %v376, %v377
      %v379 = vrot.slane %v378, 2
      %v380 = vadd.f32 %v378, %v379
      %v381 = vrot.slane %v380, 1
      %v382 = vadd.f32 %v380, %v381
      %v383 = vadd.f32 %v365, %v369
      %v384 = vsel %vm337, %v373, 0.0
      %v385 = vadd.f32 %v383, %v384
      %v386 = vrot.slane %v385, 4
      %v387 = vadd.f32 %v385, %v386
      %v388 = vrot.slane %v387, 2
      %v389 = vadd.f32 %v387, %v388
      %v390 = vrot.slane %v389, 1
      %v391 = vadd.f32 %v389, %v390
      %v392 = vrcp.pop %v382
      %v393 = vrcp.pop %v391
      %v394 = vmul.f32 %v363, %v392
      %v395 = vmul.f32 %v365, %v393
      %v396 = vmul.f32 %v367, %v392
      %v397 = vmul.f32 %v369, %v393
      %v398 = vmul.f32 %v371, %v392
      %v399 = vmul.f32 %v373, %v393
      %v400 = vlaneseq
      %v401 = vshrl.u32 %v400, 7
      %v402 = vsub.s32 0, %v401
      %v403 = vrot.slane %v336, %v402
      %v404 = vlaneseq
      %v405 = vshrl.u32 %v404, 7
      %v406 = vsub.s32 1, %v405
      %v407 = vrot.slane %v336, %v406
      %vm408 = vcmp.eq.s32.totalorder %v327, %v403
      %vm409 = vcmp.eq.s32.totalorder %v327, %v407
      %vm410 = vcmp.eq.s32.totalorder %v328, %v403
      %vm411 = vcmp.eq.s32.totalorder %v328, %v407
      %vm412 = vcmp.eq.s32.totalorder %v329, %v403
      %vm413 = vcmp.eq.s32.totalorder %v329, %v407
      %v414 = vsel %vm408, %v394, 0.0
      %v415 = vsel %vm409, %v395, 0.0
      %v416 = vsel %vm410, %v396, 0.0
      %v417 = vsel %vm411, %v397, 0.0
      %v418 = vsel %vm412, %v398, 0.0
      %v419 = vsel %vm413, %v399, 0.0
      %v420 = vadd.f32 %v414, %v415
      %421 = vadd.xlane.f32.xlu0 %v420
      %v422 = vpop.xlane.xlu0 %421
      %v423 = vadd.f32 %v416, %v417
      %424 = vadd.xlane.f32.xlu0 %v423
      %v425 = vpop.xlane.xlu0 %424
      %v426 = vsel %vm337, %v418, 0.0
      %v427 = vsel %vm337, %v419, 0.0
      %v428 = vadd.f32 %v426, %v427
      %429 = vadd.xlane.f32.xlu0 %v428
      %v430 = vpop.xlane.xlu0 %429
      %v431 = vadd.f32 %v394, 1.0
      %v432 = vadd.f32 %v395, 1.0
      %v433 = vadd.f32 %v396, 1.0
      %v434 = vadd.f32 %v397, 1.0
      %v435 = vadd.f32 %v398, 1.0
      %v436 = vadd.f32 %v399, 1.0
      %v437 = vsel %vm408, %v431, %v394
      %v438 = vsel %vm409, %v432, %v395
      %v439 = vsel %vm410, %v433, %v396
      %v440 = vsel %vm411, %v434, %v397
      %v441 = vsel %vm412, %v435, %v398
      %v442 = vsel %vm413, %v436, %v399
      %v443 = vadd.f32 %v437, %v438
      %444 = vadd.xlane.f32.xlu0 %v443
      %v445 = vpop.xlane.xlu0 %444
      %v446 = vadd.f32 %v439, %v440
      %447 = vadd.xlane.f32.xlu0 %v446
      %v448 = vpop.xlane.xlu0 %447
      %v449 = vsel %vm337, %v441, 0.0
      %v450 = vsel %vm337, %v442, 0.0
      %v451 = vadd.f32 %v449, %v450
      %452 = vadd.xlane.f32.xlu0 %v451
      %v453 = vpop.xlane.xlu0 %452
      %v454 = vadd.f32 %v422, 0.0
      %v455 = vadd.f32 %v425, 0.0
      %v456 = vadd.f32 %v430, 0.0
      %v457 = vadd.f32 %v445, 0.0
      %v458 = vadd.f32 %v448, 0.0
      %v459 = vadd.f32 %v453, 0.0
      %v460 = vld [vmem:[%s304] sm:$0xff]
      %v461 = vld [vmem:[%s304 + $0x8] sm:$0xff]
      %v462 = vld [vmem:[%s304 + $0x10] sm:$0x7]
      %v463 = vadd.f32 %v460, %v454
      %v464 = vadd.f32 %v461, %v455
      %v465 = vadd.f32 %v462, %v456
      %vm466 = vcmask 7168
      %467 = vst.msk [vmem:[%s304] sm:$0xff] %vm466, %v463
      %468 = vst.msk [vmem:[%s304 + $0x8] sm:$0xff] %vm466, %v464
      %vm469 = vcmask 2048
      %470 = vst.msk [vmem:[%s304 + $0x10] sm:$0x7] %vm469, %v465
      %v471 = vld [vmem:[%s313] sm:$0xff]
      %v472 = vld [vmem:[%s313 + $0x8] sm:$0xff]
      %v473 = vld [vmem:[%s313 + $0x10] sm:$0x7]
      %v474 = vadd.f32 %v471, %v457
      %v475 = vadd.f32 %v472, %v458
      %v476 = vadd.f32 %v473, %v459
      %477 = vst.msk [vmem:[%s313] sm:$0xff] %vm466, %v474
      %478 = vst.msk [vmem:[%s313 + $0x8] sm:$0xff] %vm466, %v475
      %479 = vst.msk [vmem:[%s313 + $0x10] sm:$0x7] %vm469, %v476
      %p480 = scmp.lt.s32.totalorder %s20, 1
      %s481 = scalar_select %p480, %s20, 1
      %p482 = scmp.lt.s32.totalorder %s21, 0
      %s483 = scalar_select %p482, %s21, 0
      %s484 = smul.addr %s483, 3
      %s485 = smul.addr %s481, 3
      %s486 = sadd.s32 %s484, %s485
      %s487 = smul.addr %s486, 8
      %s488 = scalar_lea.vmem %s2, %s487
      %p489 = scmp.lt.s32.totalorder %s20, 1
      %s490 = scalar_select %p489, %s20, 1
      %p491 = scmp.lt.s32.totalorder %s21, 0
      %s492 = scalar_select %p491, %s21, 0
      %s493 = smul.addr %s492, 3
      %s494 = smul.addr %s490, 3
      %s495 = sadd.s32 %s493, %s494
      %s496 = smul.addr %s495, 8
      %s497 = scalar_lea.vmem %s3, %s496
      // Predicated region
      $region33: #{tpu_custom_call.1} parent=27 // pred_check
        %p498 = pneg %p122
      $region34: #{tpu_custom_call.1} parent=27 // pred_check_branch
        %500 = sbr.rel (%p498) target = $region36
      $region35: #{tpu_custom_call.1} parent=27 // pred_region
        _
      $region36: #{tpu_custom_call.1} parent=27 // pred_fallthru
        _
      // Predicated region
      $region37: #{tpu_custom_call.1} parent=27 // pred_check
        %p501 = pneg %p150
      $region38: #{tpu_custom_call.1} parent=27 // pred_check_branch
        %503 = sbr.rel (%p501) target = $region40
      $region39: #{tpu_custom_call.1} parent=27 // pred_region
        _
      $region40: #{tpu_custom_call.1} parent=27 // pred_fallthru
        _
    $region28: #{tpu_custom_call.1} parent=5 // pred_fallthru
      _
    %p504 = scmp.le.s32.totalorder 2, %s10
    // Predicated region
    $region41: #{tpu_custom_call.1} parent=5 // pred_check
      %p505 = pneg %p504
    $region42: #{tpu_custom_call.1} parent=5 // pred_check_branch
      %507 = sbr.rel (%p505) target = $region44
    $region43: #{tpu_custom_call.1} parent=5 // pred_region
      %s508 = ssub.s32 %s10, 2
      // Predicated region
      $region45: #{tpu_custom_call.1} parent=43 // pred_check
        %p509 = pneg %p128
      $region46: #{tpu_custom_call.1} parent=43 // pred_check_branch
        %511 = sbr.rel (%p509) target = $region48
      $region47: #{tpu_custom_call.1} parent=43 // pred_region
        %p512 = scmp.lt.s32.totalorder %s23, 1
        %s513 = scalar_select %p512, %s23, 1
        %p514 = scmp.lt.s32.totalorder %s24, 0
        %s515 = scalar_select %p514, %s24, 0
        %s516 = smul.addr %s515, 3
        %s517 = smul.addr %s513, 3
        %s518 = sadd.s32 %s516, %s517
        %s519 = smul.addr %s518, 8
        %s520 = scalar_lea.vmem %s2, %s519
      $region48: #{tpu_custom_call.1} parent=43 // pred_fallthru
        _
      // Predicated region
      $region49: #{tpu_custom_call.1} parent=43 // pred_check
        %p521 = pneg %p156
      $region50: #{tpu_custom_call.1} parent=43 // pred_check_branch
        %523 = sbr.rel (%p521) target = $region52
      $region51: #{tpu_custom_call.1} parent=43 // pred_region
        %p524 = scmp.lt.s32.totalorder %s23, 1
        %s525 = scalar_select %p524, %s23, 1
        %p526 = scmp.lt.s32.totalorder %s24, 0
        %s527 = scalar_select %p526, %s24, 0
        %s528 = smul.addr %s527, 3
        %s529 = smul.addr %s525, 3
        %s530 = sadd.s32 %s528, %s529
        %s531 = smul.addr %s530, 8
        %s532 = scalar_lea.vmem %s3, %s531
      $region52: #{tpu_custom_call.1} parent=43 // pred_fallthru
        _
    $region44: #{tpu_custom_call.1} parent=5 // pred_fallthru
      _
  $region6: #{tpu_custom_call.1} parent=0 // loop_footer
    %s14 = sadd.s32 1, %s10
  $region7: #{tpu_custom_call.1} parent=0 // loop_footer_branch
    %9 = sbr.rel target = $region3
  $region8: #{tpu_custom_call.1} parent=0 // loop_exit
    _

</llo_original>
